<compile_context>
chip_gen: v6e
topology: v6e:2x2x1
jax: 0.10.0
libtpu: 0.0.40
codegen_flags: <defaults>
</compile_context>

<pallas_src>
import functools

import jax
import jax.numpy as jnp
import numpy as np
from jax.experimental import pallas as pl
from jax.experimental.pallas import tpu as pltpu


def _round_up(x, m):
    return ((x + m - 1) // m) * m


def _cdiv(a, b):
    return -(-a // b)


def _f1_loss_kernel(p_ref, l_ref, o_ref, *, batch, block_rows):
    core = pl.program_id(0)   # "parallel" axis (one half of the batch per TensorCore)
    i = pl.program_id(1)      # "arbitrary" axis (batch tiles within this core's half)

    @pl.when(i == 0)
    def _init():
        o_ref[...] = jnp.zeros_like(o_ref)

    # Global (unclamped) row index of each row of this tile.  Rows >= batch are
    # padding (partial last tile or the clamped duplicate tile) and are zeroed
    # BEFORE the reductions, so no inf/NaN is ever produced.
    row0 = (core * pl.num_programs(1) + i) * block_rows
    rows = jax.lax.broadcasted_iota(jnp.int32, (block_rows, 1), 0) + row0
    valid = rows < batch                                          # (TB, 1)

    p = jnp.where(valid, p_ref[...].astype(jnp.float32), 0.0)     # (TB, C)
    l = jnp.where(valid, l_ref[...].astype(jnp.float32), 0.0)     # (TB, C)

    eps = jnp.float32(1e-6)
    num_pos = jnp.sum(p, axis=1, keepdims=True) + eps             # (TB, 1)
    num_pos_hat = jnp.sum(l, axis=1, keepdims=True) + eps         # (TB, 1)
    tp = jnp.sum(l * p, axis=1, keepdims=True)                    # (TB, 1)

    # fs = precise*recall / (precise+recall+eps) folded into a single divide:
    #    = tp^2 / (tp*(num_pos+num_pos_hat) + eps*num_pos*num_pos_hat)
    # For masked rows tp == 0 and the denominator is eps^3 > 0, so fs == 0.
    denom = tp * (num_pos + num_pos_hat) + eps * (num_pos * num_pos_hat)
    fs = (tp * tp) / denom                                        # (TB, 1)

    # Accumulate this core's partial sum of fs directly into its resident output block.
    o_ref[...] += jnp.sum(fs, axis=0, keepdims=True).reshape(1, 1, 1)


@jax.jit
def f1_loss_pallas(inputs, target):
    """inputs, target: float [B, C]; returns scalar float32 soft-F1 loss."""
    b, c = inputs.shape
    it_in = jnp.dtype(inputs.dtype).itemsize
    it_tg = jnp.dtype(target.dtype).itemsize

    # Dtype-aware sublane multiple: (8,128) f32 tiles, (16,128) bf16, (32,128) int8/fp8.
    sub = max(8, 32 // min(it_in, it_tg))
    lane_c = _round_up(c, 128)                     # VMEM lane padding of the class dim

    # Size TB from a VMEM budget: 2 pipeline buffers x (inputs+target) rows must stay
    # under ~8 MiB total (safe for v5e's 16 MiB scoped default, v6e's 32 MiB, and
    # v7x's 64 MiB physical VMEM), giving ~2-4 MiB per block -> near HBM roofline.
    bytes_per_row = lane_c * (it_in + it_tg)
    budget_total = 8 * 1024 * 1024
    tb = max(sub, ((budget_total // 2) // bytes_per_row) // sub * sub)
    # Don't make TB bigger than one core's share of the batch actually needs.
    tb = min(tb, _round_up(max(1, _cdiv(b, 2)), sub))

    tiles_total = _cdiv(b, tb)                     # number of real batch tiles
    ncores = 2 if tiles_total >= 2 else 1          # v7x: one half of the batch per TC
    inner = _cdiv(tiles_total, ncores)             # tiles per core
    needs_clamp = ncores * inner > tiles_total     # odd tile count -> duplicate tile

    def in_index_map(core, i):
        blk = core * inner + i
        if needs_clamp:
            # Clamp the duplicate trailing tile onto the last real tile; its global
            # rows are all >= batch so the kernel masks its contribution to zero.
            blk = jnp.minimum(blk, tiles_total - 1)
        return (blk, 0)

    kernel = functools.partial(_f1_loss_kernel, batch=b, block_rows=tb)

    partial_sums = pl.pallas_call(
        kernel,
        out_shape=jax.ShapeDtypeStruct((ncores, 1, 1), jnp.float32),
        grid_spec=pltpu.PrefetchScalarGridSpec(
            num_scalar_prefetch=0,
            grid=(ncores, inner),
            in_specs=[
                pl.BlockSpec((tb, c), in_index_map),
                pl.BlockSpec((tb, c), in_index_map),
            ],
            # Last two block dims equal the full array dims -> no (8,128) constraint.
            out_specs=pl.BlockSpec((1, 1, 1), lambda core, i: (core, 0, 0)),
        ),
        compiler_params=pltpu.CompilerParams(
            dimension_semantics=("parallel", "arbitrary"),
            vmem_limit_bytes=32 * 1024 * 1024,
        ),
        cost_estimate=pl.CostEstimate(
            flops=5 * b * c,
            transcendentals=0,
            bytes_accessed=b * c * (it_in + it_tg),
        ),
    )(inputs, target)

    # Combine the per-core partial fs-sums and finish the loss in the wrapper.
    return 1.0 - jnp.sum(partial_sums) / jnp.float32(b)


def _f1_loss_ref(p, l):
    eps = 1e-6
    num_pos = jnp.sum(p, axis=1) + eps
    num_pos_hat = jnp.sum(l, axis=1) + eps
    tp = jnp.sum(l * p, axis=1)
    precise = tp / num_pos
    recall = tp / num_pos_hat
    fs = precise * recall / (precise + recall + eps)
    return 1.0 - jnp.sum(fs) / p.shape[0]


if __name__ == "__main__":
    key = jax.random.PRNGKey(0)
    kx, kt = jax.random.split(key)

    # Small shape consistent with the module (multi-label probs + binary labels).
    B, C = 2, 25
    probs = jax.nn.sigmoid(jax.random.normal(kx, (B, C), dtype=jnp.float32))
    labels = (jax.random.uniform(kt, (B, C)) > 0.5).astype(jnp.float32)

    loss = jax.block_until_ready(f1_loss_pallas(probs, labels))
    ref = _f1_loss_ref(probs, labels)
    assert np.allclose(np.asarray(loss), np.asarray(ref), rtol=1e-5, atol=1e-6), (
        float(loss), float(ref))

    # Exercise the multi-tile, dual-core and padded/clamped-tile paths at modest sizes.
    for B2 in (300, 12000):
        kx2, kt2 = jax.random.split(jax.random.PRNGKey(B2))
        p2 = jax.nn.sigmoid(jax.random.normal(kx2, (B2, C), dtype=jnp.float32))
        l2 = (jax.random.uniform(kt2, (B2, C)) > 0.5).astype(jnp.float32)
        out2 = jax.block_until_ready(f1_loss_pallas(p2, l2))
        ref2 = _f1_loss_ref(p2, l2)
        assert np.allclose(np.asarray(out2), np.asarray(ref2), rtol=1e-4, atol=1e-5), (
            B2, float(out2), float(ref2))

    print("KERNEL_OK")
</pallas_src>

<mosaic_0001>
module attributes {stable_mosaic.version = 11 : i64} {
  func.func @_f1_loss_kernel(%arg0: i32, %arg1: i32, %arg2: memref<8x25xf32, #tpu.memory_space<vmem>>, %arg3: memref<8x25xf32, #tpu.memory_space<vmem>>, %arg4: memref<1x1x1xf32, #tpu.memory_space<vmem>>) attributes {dimension_semantics = [#tpu.dimension_semantics<parallel>, #tpu.dimension_semantics<arbitrary>], iteration_bounds = array<i64: 1, 1>, scalar_prefetch = 0 : i64, scratch_operands = 0 : i64, tpu.core_type = #tpu.core_type<tc>, window_params = [{transform_indices = @transform_0, window_bounds = array<i64: 8, 25>}, {transform_indices = @transform_1, window_bounds = array<i64: 8, 25>}, {transform_indices = @transform_2, window_bounds = array<i64: 1, 1, 1>}]} {
    %c0_i32 = arith.constant 0 : i32
    %0 = arith.cmpi eq, %arg1, %c0_i32 : i32
    %1 = arith.extui %0 : i1 to i32
    %c0_i32_0 = arith.constant 0 : i32
    %2 = arith.cmpi ne, %1, %c0_i32_0 : i32
    scf.if %2 {
      %cst_18 = arith.constant 0.000000e+00 : f32
      %46 = vector.broadcast %cst_18 : f32 to vector<1x1x1xf32>
      %c0_19 = arith.constant 0 : index
      %c0_20 = arith.constant 0 : index
      %c0_21 = arith.constant 0 : index
      %47 = vector.load %arg4[%c0_19, %c0_20, %c0_21] : memref<1x1x1xf32, #tpu.memory_space<vmem>>, vector<1x1x1xf32>
      tpu.vector_store %arg4[%c0_19, %c0_20, %c0_21], %46 {strides = array<i32>} : memref<1x1x1xf32, #tpu.memory_space<vmem>>, vector<1x1x1xf32>,
    } else {
    }
    %c1_i32 = arith.constant 1 : i32
    %3 = arith.muli %arg0, %c1_i32 : i32
    %4 = arith.addi %3, %arg1 : i32
    %c8_i32 = arith.constant 8 : i32
    %5 = arith.muli %4, %c8_i32 : i32
    %6 = tpu.iota {dimensions = array<i32: 0>} : vector<8x1xi32>
    %7 = vector.broadcast %5 : i32 to vector<8x1xi32>
    %8 = arith.addi %6, %7 : vector<8x1xi32>
    %c2_i32 = arith.constant 2 : i32
    %9 = vector.broadcast %c2_i32 : i32 to vector<8x1xi32>
    %10 = arith.cmpi slt, %8, %9 : vector<8x1xi32>
    %c0 = arith.constant 0 : index
    %c0_1 = arith.constant 0 : index
    %11 = vector.load %arg2[%c0, %c0_1] : memref<8x25xf32, #tpu.memory_space<vmem>>, vector<8x25xf32>
    %cst = arith.constant 0.000000e+00 : f32
    %12 = vector.shape_cast %10 : vector<8x1xi1> to vector<8x1xi1>
    %13 = vector.broadcast %12 : vector<8x1xi1> to vector<8x25xi1>
    %14 = vector.broadcast %cst : f32 to vector<8x25xf32>
    %15 = arith.select %13, %11, %14 : vector<8x25xi1>, vector<8x25xf32>
    %c0_2 = arith.constant 0 : index
    %c0_3 = arith.constant 0 : index
    %16 = vector.load %arg3[%c0_2, %c0_3] : memref<8x25xf32, #tpu.memory_space<vmem>>, vector<8x25xf32>
    %cst_4 = arith.constant 0.000000e+00 : f32
    %17 = vector.shape_cast %10 : vector<8x1xi1> to vector<8x1xi1>
    %18 = vector.broadcast %17 : vector<8x1xi1> to vector<8x25xi1>
    %19 = vector.broadcast %cst_4 : f32 to vector<8x25xf32>
    %20 = arith.select %18, %16, %19 : vector<8x25xi1>, vector<8x25xf32>
    %cst_5 = arith.constant dense<0.000000e+00> : vector<8xf32>
    %21 = vector.multi_reduction <add>, %15, %cst_5 [1] : vector<8x25xf32> to vector<8xf32>
    %22 = vector.shape_cast %21 : vector<8xf32> to vector<8x1xf32>
    %cst_6 = arith.constant 9.99999997E-7 : f32
    %23 = vector.broadcast %cst_6 : f32 to vector<8x1xf32>
    %24 = arith.addf %22, %23 : vector<8x1xf32>
    %cst_7 = arith.constant dense<0.000000e+00> : vector<8xf32>
    %25 = vector.multi_reduction <add>, %20, %cst_7 [1] : vector<8x25xf32> to vector<8xf32>
    %26 = vector.shape_cast %25 : vector<8xf32> to vector<8x1xf32>
    %cst_8 = arith.constant 9.99999997E-7 : f32
    %27 = vector.broadcast %cst_8 : f32 to vector<8x1xf32>
    %28 = arith.addf %26, %27 : vector<8x1xf32>
    %29 = arith.mulf %20, %15 : vector<8x25xf32>
    %cst_9 = arith.constant dense<0.000000e+00> : vector<8xf32>
    %30 = vector.multi_reduction <add>, %29, %cst_9 [1] : vector<8x25xf32> to vector<8xf32>
    %31 = vector.shape_cast %30 : vector<8xf32> to vector<8x1xf32>
    %32 = arith.addf %24, %28 : vector<8x1xf32>
    %33 = arith.mulf %31, %32 : vector<8x1xf32>
    %34 = arith.mulf %24, %28 : vector<8x1xf32>
    %cst_10 = arith.constant 9.99999997E-7 : f32
    %35 = vector.broadcast %cst_10 : f32 to vector<8x1xf32>
    %36 = arith.mulf %35, %34 : vector<8x1xf32>
    %37 = arith.addf %33, %36 : vector<8x1xf32>
    %38 = arith.mulf %31, %31 : vector<8x1xf32>
    %39 = arith.divf %38, %37 : vector<8x1xf32>
    %c0_11 = arith.constant 0 : index
    %c0_12 = arith.constant 0 : index
    %c0_13 = arith.constant 0 : index
    %40 = vector.load %arg4[%c0_11, %c0_12, %c0_13] : memref<1x1x1xf32, #tpu.memory_space<vmem>>, vector<1x1x1xf32>
    %cst_14 = arith.constant dense<0.000000e+00> : vector<1xf32>
    %41 = vector.multi_reduction <add>, %39, %cst_14 [0] : vector<8x1xf32> to vector<1xf32>
    %42 = vector.shape_cast %41 : vector<1xf32> to vector<1x1xf32>
    %43 = vector.shape_cast %42 : vector<1x1xf32> to vector<1x1x1xf32>
    %44 = arith.addf %40, %43 : vector<1x1x1xf32>
    %c0_15 = arith.constant 0 : index
    %c0_16 = arith.constant 0 : index
    %c0_17 = arith.constant 0 : index
    %45 = vector.load %arg4[%c0_15, %c0_16, %c0_17] : memref<1x1x1xf32, #tpu.memory_space<vmem>>, vector<1x1x1xf32>
    tpu.vector_store %arg4[%c0_15, %c0_16, %c0_17], %44 {strides = array<i32>} : memref<1x1x1xf32, #tpu.memory_space<vmem>>, vector<1x1x1xf32>,
    return
  }
  func.func @transform_0(%arg0: i32, %arg1: i32) -> (i32, i32) {
    %c1_i32 = arith.constant 1 : i32
    %0 = arith.muli %arg0, %c1_i32 : i32
    %1 = arith.addi %0, %arg1 : i32
    %c0_i32 = arith.constant 0 : i32
    %c0_i32_0 = arith.constant 0 : i32
    return %1, %c0_i32 : i32, i32
  }
  func.func @transform_1(%arg0: i32, %arg1: i32) -> (i32, i32) {
    %c1_i32 = arith.constant 1 : i32
    %0 = arith.muli %arg0, %c1_i32 : i32
    %1 = arith.addi %0, %arg1 : i32
    %c0_i32 = arith.constant 0 : i32
    %c0_i32_0 = arith.constant 0 : i32
    return %1, %c0_i32 : i32, i32
  }
  func.func @transform_2(%arg0: i32, %arg1: i32) -> (i32, i32, i32) {
    %c0_i32 = arith.constant 0 : i32
    %c0_i32_0 = arith.constant 0 : i32
    %c0_i32_1 = arith.constant 0 : i32
    return %arg0, %c0_i32, %c0_i32_0 : i32, i32, i32
  }
}

</mosaic_0001>

<llo_original>
// kernel: f1_loss_pallas.1
$region0: #{f1_loss_pallas.1}
  #allocation0 [shape = 'u32[]', space=smem, size = 0x4, offset = 0x4, fixed_abs, tag = 'smem constant byte address 0x4 - core index']
  #allocation1 [shape = 'u32[144,128]{1,0:T(1,128)}', space=vmem, size = 0x12000, scoped, tag = 'internal scratch']
  %s0 = inlined_call_operand.hbm [shape: f32[2,25], index: 0, kind: input, shape index: {}]
  %s1 = inlined_call_operand.hbm [shape: f32[2,25], index: 1, kind: input, shape index: {}]
  %s2 = inlined_call_operand.hbm [shape: f32[1,1,1], index: 2, kind: output, shape index: {}]
  %s3 = sld [smem:[#allocation0]]
  $region30: #{f1_loss_pallas.1} parent=0
    _
  %s5 = ssub.s32 1, %s3
  %s6 = scalar_select 0, %s5, %s3
  $region1: #{f1_loss_pallas.1} parent=0
    #allocation2 [shape = 'u8[4096]{0}', space=vmem, size = 0x1000, scoped, tag = 'input window, operand 0, single buffered']
    #allocation3 [shape = 's32[1]{0}', space=sflag, size = 0x4, scoped, tag = 'scoped memory for f1_loss_pallas.1']
    #allocation4 [shape = 's32[1]{0}', space=sflag, size = 0x4, scoped, tag = 'scoped memory for f1_loss_pallas.1']
    #allocation5 [shape = 'u8[4096]{0}', space=vmem, size = 0x1000, scoped, tag = 'input window, operand 1, single buffered']
    #allocation6 [shape = 's32[1]{0}', space=sflag, size = 0x4, scoped, tag = 'scoped memory for f1_loss_pallas.1']
    #allocation7 [shape = 'u8[512]{0}', space=vmem, size = 0x400, scoped, tag = 'output window, operand 0, single buffered']
    %7 = vsyncpa [#allocation3], 0
    %8 = vsyncpa [#allocation6], 0
    %9 = vsyncpa [#allocation4], 0
    // Predicated region
    $region2: #{f1_loss_pallas.1} parent=1 // pred_check
      _
    $region3: #{f1_loss_pallas.1} parent=1 // pred_check_branch
      %11 = sbr.rel (0) target = $region5
    $region4: #{f1_loss_pallas.1} parent=1 // pred_region
      %s12 = sadd.s32 0, 0
      %s13 = smul.u32 4, %s12
      %s14 = ssub.s32 1, %s13
      %s15 = smul.u32 32, %s14
      %s17 = ssub.s32 128, %s15
      %18 = vsyncadd [#allocation3], %s17
      %p19 = scmp.ne.s32.totalorder 0, %s15
      %s20 = smul.addr %s13, 32
      %s21 = scalar_lea.hbm %s0, %s20
      %s22 = smul.u32 2, %s14
      %s23 = sshll.u32 [#allocation2], 4
      %s24 = int_to_ptr.vmem [resolvable:$true] %s23
      %s25 = sshll.u32 %s22, 4
      %29 = dma.hbm_to_vmem [thread:$0]  (%p19), %s21, %s25, %s24, [#allocation3], 32, 32, 2
    $region5: #{f1_loss_pallas.1} parent=1 // pred_fallthru
      _
    // Predicated region
    $region6: #{f1_loss_pallas.1} parent=1 // pred_check
      _
    $region7: #{f1_loss_pallas.1} parent=1 // pred_check_branch
      %31 = sbr.rel (0) target = $region9
    $region8: #{f1_loss_pallas.1} parent=1 // pred_region
      %s32 = sadd.s32 0, 0
      %s33 = smul.u32 4, %s32
      %s34 = ssub.s32 1, %s33
      %s35 = smul.u32 32, %s34
      %s37 = ssub.s32 128, %s35
      %38 = vsyncadd [#allocation6], %s37
      %p39 = scmp.ne.s32.totalorder 0, %s35
      %s40 = smul.addr %s33, 32
      %s41 = scalar_lea.hbm %s1, %s40
      %s42 = smul.u32 2, %s34
      %s43 = sshll.u32 [#allocation5], 4
      %s44 = int_to_ptr.vmem [resolvable:$true] %s43
      %s45 = sshll.u32 %s42, 4
      %49 = dma.hbm_to_vmem [thread:$0]  (%p39), %s41, %s45, %s44, [#allocation6], 32, 32, 2
    $region9: #{f1_loss_pallas.1} parent=1 // pred_fallthru
      _
    // Predicated region
    $region10: #{f1_loss_pallas.1} parent=1 // pred_check
      _
    $region11: #{f1_loss_pallas.1} parent=1 // pred_check_branch
      %51 = sbr.rel (0) target = $region13
    $region12: #{f1_loss_pallas.1} parent=1 // pred_region
      %52 = dma.done [#allocation3], 128
    $region13: #{f1_loss_pallas.1} parent=1 // pred_fallthru
      _
    // Predicated region
    $region14: #{f1_loss_pallas.1} parent=1 // pred_check
      _
    $region15: #{f1_loss_pallas.1} parent=1 // pred_check_branch
      %54 = sbr.rel (0) target = $region17
    $region16: #{f1_loss_pallas.1} parent=1 // pred_region
      %55 = dma.done [#allocation6], 128
    $region17: #{f1_loss_pallas.1} parent=1 // pred_fallthru
      _
    %s56 = sadd.s32 0, 0
    %s57 = smul.u32 4, %s56
    %s58 = ssub.s32 1, %s57
    %s59 = smul.u32 32, %s58
    %s60 = sadd.s32 0, 0
    %s61 = smul.u32 4, %s60
    %s62 = ssub.s32 1, %s61
    %s63 = smul.u32 32, %s62
    %p64 = scmp.eq.s32.totalorder 0, 0
    // Predicated region
    $region18: #{f1_loss_pallas.1} parent=1 // pred_check
      %p65 = pneg %p64
    $region19: #{f1_loss_pallas.1} parent=1 // pred_check_branch
      %67 = sbr.rel (%p65) target = $region21
    $region20: #{f1_loss_pallas.1} parent=1 // pred_region
      %vm68 = vcmask 0
      %69 = vst.msk [vmem:[#allocation7] sm:$0x1] %vm68, 0.0
    $region21: #{f1_loss_pallas.1} parent=1 // pred_fallthru
      _
    %s70 = sadd.s32 0, 0
    %s71 = smul.u32 %s70, 8
    %v72 = vlaneseq
    %v73 = vshrl.u32 %v72, 7
    %v74 = vstv %s71
    %v75 = vadd.s32 %v73, %v74
    %vm76 = vcmp.lt.s32.totalorder %v75, 2
    %v77 = vld [vmem:[#allocation2] sm:$0xff]
    %v78 = vsel %vm76, 1, 0
    %vm79 = vcmp.eq.s32.totalorder %v78, 1
    %v80 = vsel %vm79, %v77, 0.0
    %v81 = vld [vmem:[#allocation5] sm:$0xff]
    %v82 = vsel %vm79, %v81, 0.0
    %vm83 = vcmask 203776
    %v84 = vsel %vm83, %v80, 0.0
    %85 = vadd.xlane.f32.xlu0 %v84
    %v86 = vpop.xlane.xlu0 %85
    %v87 = vadd.f32 %v86, 1e-06
    %v88 = vsel %vm83, %v82, 0.0
    %89 = vadd.xlane.f32.xlu0 %v88
    %v90 = vpop.xlane.xlu0 %89
    %v91 = vadd.f32 %v90, 1e-06
    %v92 = vmul.f32 %v82, %v80
    %v93 = vsel %vm83, %v92, 0.0
    %94 = vadd.xlane.f32.xlu0 %v93
    %v95 = vpop.xlane.xlu0 %94
    %v96 = vadd.f32 %v87, %v91
    %v97 = vmul.f32 %v95, %v96
    %v98 = vmul.f32 %v87, %v91
    %v99 = vmul.f32 %v98, 1e-06
    %v100 = vadd.f32 %v97, %v99
    %v101 = vmul.f32 %v95, %v95
    %v102 = vrcp.pop %v100
    %v103 = vmul.f32 %v101, %v102
    %v104 = vld [vmem:[#allocation7] sm:$0x1]
    %v105 = vrot.slane %v103, 4
    %v106 = vadd.f32 %v103, %v105
    %v107 = vrot.slane %v106, 2
    %v108 = vadd.f32 %v106, %v107
    %v109 = vrot.slane %v108, 1
    %v110 = vadd.f32 %v108, %v109
    %v111 = vadd.f32 %v104, %v110
    %vm112 = vcmask 0
    %113 = vst.msk [vmem:[#allocation7] sm:$0x1] %vm112, %v111
    // Predicated region
    $region22: #{f1_loss_pallas.1} parent=1 // pred_check
      _
    $region23: #{f1_loss_pallas.1} parent=1 // pred_check_branch
      %115 = sbr.rel (0) target = $region25
    $region24: #{f1_loss_pallas.1} parent=1 // pred_region
      %s117 = ssub.s32 16, 16
      %118 = vsyncadd [#allocation4], %s117
      %s120 = sshll.u32 [#allocation7], 4
      %s121 = int_to_ptr.vmem [resolvable:$true] %s120
      %123 = dma.vmem_to_hbm [thread:$0]  %s121, 16, %s2, [#allocation4]
    $region25: #{f1_loss_pallas.1} parent=1 // pred_fallthru
      _
    // Predicated region
    $region26: #{f1_loss_pallas.1} parent=1 // pred_check
      _
    $region27: #{f1_loss_pallas.1} parent=1 // pred_check_branch
      %125 = sbr.rel (0) target = $region29
    $region28: #{f1_loss_pallas.1} parent=1 // pred_region
      %126 = dma.done [#allocation4], 16
    $region29: #{f1_loss_pallas.1} parent=1 // pred_fallthru
      _
    %127 = vsyncpa [#allocation3], 1
    %128 = vsyncpa [#allocation6], 1
    %129 = vsyncpa [#allocation4], 1

</llo_original>
